<compile_context>
chip_gen: v7x
topology: tpu7x:2x2x1
jax: 0.10.0
libtpu: 0.0.40
codegen_flags: <defaults>
</compile_context>

<pallas_src>
import jax
import jax.numpy as jnp
from jax.experimental import pallas as pl
from jax.experimental.pallas import tpu as pltpu


# --------------------------------------------------------------------------- #
# Kernel
# --------------------------------------------------------------------------- #
def _rope_kernel(x_ref, cos_ref, sin_e_ref, sin_o_ref, o_ref):
    """out = x*cos + roll(x,-1)*sin_even + roll(x,+1)*sin_odd on a
    (TB, TR, lanes) tile.  sin_even/sin_odd are pre-masked in the wrapper so no
    iota / parity select is needed; wraparound lanes of the rolls are killed by
    the zeros in the tables."""
    x = x_ref[...].astype(jnp.float32)
    lanes = x.shape[-1]
    last = x.ndim - 1

    # np.roll semantics: roll(x, s)[k] == x[(k - s) % lanes]
    fwd = pltpu.roll(x, 1, last)          # fwd[k] = x[k-1]  (feeds odd lanes)
    bwd = pltpu.roll(x, lanes - 1, last)  # bwd[k] = x[k+1]  (feeds even lanes)

    cos = cos_ref[...][None]              # (1, TR, lanes) -> broadcast over TB
    sin_e = sin_e_ref[...][None]
    sin_o = sin_o_ref[...][None]

    out = x * cos + bwd * sin_e + fwd * sin_o
    o_ref[...] = out.astype(o_ref.dtype)


# --------------------------------------------------------------------------- #
# Tiling helpers
# --------------------------------------------------------------------------- #
def _round_up(a, b):
    return ((a + b - 1) // b) * b


def _fold_factor(d_model):
    """How many consecutive positions to fold into the lane axis so the last
    dim is a multiple of 128."""
    if d_model % 128 == 0:
        return 1
    if 128 % d_model == 0:
        return 128 // d_model
    return 1  # awkward d_model (e.g. 96): leave un-folded


def _default_budget_bytes():
    """Generation-aware double-buffered working-set budget."""
    try:
        vmem = pltpu.get_tpu_info().vmem_capacity_bytes
    except Exception:
        return 12 * 2**20                      # unknown -> v5e-safe
    if vmem >= 96 * 2**20:                     # v5e / v6e: 128 MiB physical
        return 32 * 2**20
    return 20 * 2**20                          # v7x: 64 MiB per TensorCore


def _largest_divisor_leq(n, cap):
    cap = max(1, min(n, cap, 1024))
    for d in range(cap, 0, -1):
        if n % d == 0:
            return d
    return 1


def _choose_tiles(batch, s_rows, lanes, itemsize, budget_bytes):
    """Pick (batch tile, seq-row tile, padded seq rows).

    Rows are in the folded layout (one row = `lanes` values).  Working set per
    row (double-buffered) ~ 2*(x + out) * itemsize + 2*3 f32 trig tables plus
    in-kernel f32 temps.
    """
    sub = max(8, 32 // max(itemsize, 1))       # sublane multiple for x dtype

    per_row = 2 * (2 * lanes * itemsize + 3 * lanes * 4) + 2 * lanes * 4
    max_rows = max(sub, budget_bytes // max(per_row, 1))

    if s_rows <= sub:
        # Tiny / decode-like: one full-extent seq block (allowed: dim == full).
        tr = s_rows
        s_rows_pad = s_rows
    else:
        tr = min((max_rows // sub) * sub, _round_up(s_rows, sub))
        tr = max(tr, sub)
        # v7x megacore: when batch == 1, keep at least 2 seq blocks.
        if batch == 1 and tr >= s_rows and s_rows >= 2 * sub:
            tr = _round_up(pl.cdiv(s_rows, 2), sub)
        s_rows_pad = _round_up(s_rows, tr)

    n_seq_blocks = s_rows_pad // tr

    # Batch tile: fill the remaining budget with extra batch elements per step.
    per_b = 2 * 2 * tr * lanes * itemsize + 2 * tr * lanes * 4
    trig_bytes = 2 * 3 * tr * lanes * 4
    tb_cap = max(1, (budget_bytes - trig_bytes) // max(per_b, 1))
    if n_seq_blocks == 1 and batch > 1:
        # keep >= 2 grid steps so both v7x TensorCores get work
        tb_cap = min(tb_cap, max(1, batch // 2))
    tb = _largest_divisor_leq(batch, tb_cap)
    return tb, tr, s_rows_pad


# --------------------------------------------------------------------------- #
# Wrapper
# --------------------------------------------------------------------------- #
def rotary_embedding(x, inv_freq, offset=0, *, budget_bytes=None,
                     donate_x=False):
    """Apply interleaved RoPE to x of shape (..., seq_len, d_model)."""
    orig_shape = x.shape
    seq_len, d_model = x.shape[-2], x.shape[-1]
    assert d_model % 2 == 0, "d_model must be even"

    batch = 1
    for dim in x.shape[:-2]:
        batch *= dim
    x3 = x.reshape(batch, seq_len, d_model)

    k = _fold_factor(d_model)
    lanes = k * d_model
    s_rows = pl.cdiv(seq_len, k)

    itemsize = jnp.dtype(x.dtype).itemsize
    if budget_bytes is None:
        budget_bytes = _default_budget_bytes()
    tb, tr, s_rows_pad = _choose_tiles(batch, s_rows, lanes, itemsize,
                                       budget_bytes)
    s_pad = s_rows_pad * k

    if s_pad != seq_len:
        x3 = jnp.pad(x3, ((0, 0), (0, s_pad - seq_len), (0, 0)))
    x3 = x3.reshape(batch, s_rows_pad, lanes)

    # Tiny trig tables (built once; offset may be a traced scalar, so decode
    # steps don't recompile).  Note: positions beyond 2^24 lose f32 exactness.
    pos = (jnp.asarray(offset, jnp.int32)
           + jnp.arange(s_pad, dtype=jnp.int32)).astype(jnp.float32)
    freqs = pos[:, None] * inv_freq.astype(jnp.float32)[None, :]   # (s_pad, D/2)
    cos = jnp.cos(freqs)
    sin = jnp.sin(freqs)
    zeros = jnp.zeros_like(sin)
    cos_full = jnp.repeat(cos, 2, axis=-1).reshape(s_rows_pad, lanes)
    sin_even = jnp.stack([-sin, zeros], axis=-1).reshape(s_pad, d_model)
    sin_even = sin_even.reshape(s_rows_pad, lanes)
    sin_odd = jnp.stack([zeros, sin], axis=-1).reshape(s_pad, d_model)
    sin_odd = sin_odd.reshape(s_rows_pad, lanes)

    grid = (s_rows_pad // tr, batch // tb)   # batch innermost -> trig resident

    # Explicit VMEM limit: working set (double-buffered blocks + f32 temps),
    # with headroom, clamped so it is safe on v5e defaults and v7x's 64 MiB.
    ws = (2 * (2 * tb * tr * lanes * itemsize + 3 * tr * lanes * 4)
          + 2 * tb * tr * lanes * 4)
    vmem_limit = int(min(48 * 2**20, max(24 * 2**20, 2 * ws)))

    out3 = pl.pallas_call(
        _rope_kernel,
        out_shape=jax.ShapeDtypeStruct((batch, s_rows_pad, lanes), x.dtype),
        grid=grid,
        in_specs=[
            pl.BlockSpec((tb, tr, lanes), lambda s, b: (b, s, 0)),   # x
            pl.BlockSpec((tr, lanes), lambda s, b: (s, 0)),          # cos
            pl.BlockSpec((tr, lanes), lambda s, b: (s, 0)),          # sin_even
            pl.BlockSpec((tr, lanes), lambda s, b: (s, 0)),          # sin_odd
        ],
        out_specs=pl.BlockSpec((tb, tr, lanes), lambda s, b: (b, s, 0)),
        compiler_params=pltpu.CompilerParams(
            dimension_semantics=("parallel", "parallel"),
            vmem_limit_bytes=vmem_limit),
        input_output_aliases=({0: 0} if donate_x else {}),
    )(x3, cos_full, sin_even, sin_odd)

    out = out3.reshape(batch, s_pad, d_model)
    if s_pad != seq_len:
        out = out[:, :seq_len, :]
    return out.reshape(orig_shape)


# --------------------------------------------------------------------------- #
# Pure-JAX reference (mirrors the PyTorch forward exactly)
# --------------------------------------------------------------------------- #
def _rope_reference(x, inv_freq, offset=0):
    seq_len = x.shape[-2]
    pos = jnp.arange(offset, seq_len + offset, dtype=jnp.float32)
    pos_emb = jnp.einsum("i,j->ij", pos, inv_freq.astype(jnp.float32))
    sin, cos = jnp.sin(pos_emb), jnp.cos(pos_emb)
    x_even, x_odd = x[..., 0::2], x[..., 1::2]
    out_even = x_even * cos - x_odd * sin
    out_odd = x_even * sin + x_odd * cos
    return jnp.stack([out_even, out_odd], axis=-1).reshape(x.shape)


if __name__ == "__main__":
    # Small shapes consistent with the module: batch=2, seq_len=8, d_model=32.
    B, S, D = 2, 8, 32
    base = 10000.0

    key = jax.random.PRNGKey(0)
    x = jax.random.normal(key, (B, S, D), dtype=jnp.float32)

    # Deterministic buffer init, as in the module's __init__.
    inv_freq = base ** (-jnp.arange(0, D, 2, dtype=jnp.float32) / D)

    out = jax.block_until_ready(rotary_embedding(x, inv_freq, offset=0))
    ref = _rope_reference(x, inv_freq, offset=0)
    assert out.shape == x.shape
    assert jnp.allclose(out, ref, atol=1e-5, rtol=1e-5), "mismatch (offset=0)"

    out5 = jax.block_until_ready(rotary_embedding(x, inv_freq, offset=5))
    ref5 = _rope_reference(x, inv_freq, offset=5)
    assert jnp.allclose(out5, ref5, atol=1e-5, rtol=1e-5), "mismatch (offset=5)"

    # Non-divisible seq_len exercises the padding path (no full-seq fallback).
    x10 = jax.random.normal(jax.random.PRNGKey(0), (B, 10, D), jnp.float32)
    out10 = jax.block_until_ready(rotary_embedding(x10, inv_freq, offset=3))
    ref10 = _rope_reference(x10, inv_freq, offset=3)
    assert jnp.allclose(out10, ref10, atol=1e-5, rtol=1e-5), "mismatch (S=10)"

    print("KERNEL_OK")
</pallas_src>

<mosaic_0001>
module attributes {stable_mosaic.version = 11 : i64} {
  func.func @_rope_kernel(%arg0: i32, %arg1: i32, %arg2: memref<1x2x128xf32, #tpu.memory_space<vmem>>, %arg3: memref<2x128xf32, #tpu.memory_space<vmem>>, %arg4: memref<2x128xf32, #tpu.memory_space<vmem>>, %arg5: memref<2x128xf32, #tpu.memory_space<vmem>>, %arg6: memref<1x2x128xf32, #tpu.memory_space<vmem>>) attributes {dimension_semantics = [#tpu.dimension_semantics<parallel>, #tpu.dimension_semantics<parallel>], iteration_bounds = array<i64: 1, 2>, scalar_prefetch = 0 : i64, scratch_operands = 0 : i64, tpu.core_type = #tpu.core_type<tc>, window_params = [{transform_indices = @transform_0, window_bounds = array<i64: 1, 2, 128>}, {transform_indices = @transform_1, window_bounds = array<i64: 2, 128>}, {transform_indices = @transform_2, window_bounds = array<i64: 2, 128>}, {transform_indices = @transform_3, window_bounds = array<i64: 2, 128>}, {transform_indices = @transform_4, window_bounds = array<i64: 1, 2, 128>}]} {
    %c0 = arith.constant 0 : index
    %c0_0 = arith.constant 0 : index
    %c0_1 = arith.constant 0 : index
    %0 = vector.load %arg2[%c0, %c0_0, %c0_1] : memref<1x2x128xf32, #tpu.memory_space<vmem>>, vector<1x2x128xf32>
    %c1_i32 = arith.constant 1 : i32
    %1 = tpu.dynamic_rotate %0 by %c1_i32 dim 2 : vector<1x2x128xf32>, i32 -> vector<1x2x128xf32>
    %c127_i32 = arith.constant 127 : i32
    %2 = tpu.dynamic_rotate %0 by %c127_i32 dim 2 : vector<1x2x128xf32>, i32 -> vector<1x2x128xf32>
    %c0_2 = arith.constant 0 : index
    %c0_3 = arith.constant 0 : index
    %3 = vector.load %arg3[%c0_2, %c0_3] : memref<2x128xf32, #tpu.memory_space<vmem>>, vector<2x128xf32>
    %4 = vector.shape_cast %3 : vector<2x128xf32> to vector<1x2x128xf32>
    %c0_4 = arith.constant 0 : index
    %c0_5 = arith.constant 0 : index
    %5 = vector.load %arg4[%c0_4, %c0_5] : memref<2x128xf32, #tpu.memory_space<vmem>>, vector<2x128xf32>
    %6 = vector.shape_cast %5 : vector<2x128xf32> to vector<1x2x128xf32>
    %c0_6 = arith.constant 0 : index
    %c0_7 = arith.constant 0 : index
    %7 = vector.load %arg5[%c0_6, %c0_7] : memref<2x128xf32, #tpu.memory_space<vmem>>, vector<2x128xf32>
    %8 = vector.shape_cast %7 : vector<2x128xf32> to vector<1x2x128xf32>
    %9 = arith.mulf %0, %4 : vector<1x2x128xf32>
    %10 = arith.mulf %2, %6 : vector<1x2x128xf32>
    %11 = arith.addf %9, %10 : vector<1x2x128xf32>
    %12 = arith.mulf %1, %8 : vector<1x2x128xf32>
    %13 = arith.addf %11, %12 : vector<1x2x128xf32>
    %c0_8 = arith.constant 0 : index
    %c0_9 = arith.constant 0 : index
    %c0_10 = arith.constant 0 : index
    %14 = vector.load %arg6[%c0_8, %c0_9, %c0_10] : memref<1x2x128xf32, #tpu.memory_space<vmem>>, vector<1x2x128xf32>
    tpu.vector_store %arg6[%c0_8, %c0_9, %c0_10], %13 {strides = array<i32>} : memref<1x2x128xf32, #tpu.memory_space<vmem>>, vector<1x2x128xf32>,
    return
  }
  func.func @transform_0(%arg0: i32, %arg1: i32) -> (i32, i32, i32) {
    %c0_i32 = arith.constant 0 : i32
    %c0_i32_0 = arith.constant 0 : i32
    return %arg1, %arg0, %c0_i32 : i32, i32, i32
  }
  func.func @transform_1(%arg0: i32, %arg1: i32) -> (i32, i32) {
    %c0_i32 = arith.constant 0 : i32
    %c0_i32_0 = arith.constant 0 : i32
    return %arg0, %c0_i32 : i32, i32
  }
  func.func @transform_2(%arg0: i32, %arg1: i32) -> (i32, i32) {
    %c0_i32 = arith.constant 0 : i32
    %c0_i32_0 = arith.constant 0 : i32
    return %arg0, %c0_i32 : i32, i32
  }
  func.func @transform_3(%arg0: i32, %arg1: i32) -> (i32, i32) {
    %c0_i32 = arith.constant 0 : i32
    %c0_i32_0 = arith.constant 0 : i32
    return %arg0, %c0_i32 : i32, i32
  }
  func.func @transform_4(%arg0: i32, %arg1: i32) -> (i32, i32, i32) {
    %c0_i32 = arith.constant 0 : i32
    %c0_i32_0 = arith.constant 0 : i32
    return %arg1, %arg0, %c0_i32 : i32, i32, i32
  }
}

</mosaic_0001>

<llo_original>
// kernel: tpu_custom_call.1
$region0: #{tpu_custom_call.1}
  #allocation0 [shape = 'u32[]', space=smem, size = 0x4, offset = 0x4, fixed_abs, tag = 'smem constant byte address 0x4 - core index']
  #allocation1 [shape = 'u32[144,128]{1,0:T(1,128)}', space=vmem, size = 0x12000, scoped, tag = 'internal scratch']
  %s0 = inlined_call_operand.hbm [shape: f32[2,2,128], index: 0, kind: input, shape index: {}]
  %s1 = inlined_call_operand.vmem [shape: f32[2,128], index: 1, kind: input, shape index: {}]
  %s2 = inlined_call_operand.vmem [shape: f32[2,128], index: 2, kind: input, shape index: {}]
  %s3 = inlined_call_operand.vmem [shape: f32[2,128], index: 3, kind: input, shape index: {}]
  %s4 = inlined_call_operand.hbm [shape: f32[2,2,128], index: 4, kind: output, shape index: {}]
  %s5 = sld [smem:[#allocation0]]
  $region53: #{tpu_custom_call.1} parent=0
    _
  %s7 = ssub.s32 1, %s5
  %s8 = scalar_select 0, %s7, %s5
  $region1: #{tpu_custom_call.1} parent=0
    #allocation2 [shape = 'u8[2048]{0}', space=vmem, size = 0x800, scoped, tag = 'input window, operand 0']
    #allocation3 [shape = 's32[2]{0}', space=sflag, size = 0x8, scoped, tag = 'scoped memory for tpu_custom_call.1']
    #allocation4 [shape = 's32[2]{0}', space=sflag, size = 0x8, scoped, tag = 'scoped memory for tpu_custom_call.1']
    #allocation5 [shape = 'u8[2048]{0}', space=vmem, size = 0x800, scoped, tag = 'output window, operand 0']
    %9 = vsyncpa [#allocation3], 0
    %s10 = scalar_lea.sflag [#allocation3], 1
    %11 = vsyncpa %s10, 0
    %12 = vsyncpa [#allocation4], 0
    %s13 = scalar_lea.sflag [#allocation4], 1
    %14 = vsyncpa %s13, 0
    loop: start=0, step=1, limit=4
    $region2: #{tpu_custom_call.1} parent=1 // loop_pre_header
      _
    $region3: #{tpu_custom_call.1} parent=1 // loop_header
      %s16 = sphi 0, %s20
      %p17 = scmp.ge.s32.totalorder %s16, 4
      %s23 = sphi 0, %s35
      %s24 = sphi 0, %s31
      %s25 = sphi 0, %s23
      %s26 = sphi 0, %s24
      %s27 = sphi 0, %s25
      %s28 = sphi 0, %s26
      %s40 = sphi 0, %s42
      %s43 = sphi 0, %s40
      %s44 = sphi 0, %s43
      %s60 = sphi 0, %s44
      %s66 = sphi 0, %s68
      %s69 = sphi 0, %s66
      %s70 = sphi 0, %s69
      %s86 = sphi 0, %s70
      %s92 = sphi 0, %s94
      %s95 = sphi 0, %s92
      %s96 = sphi 0, %s95
      %s112 = sphi 0, %s96
      %s118 = sphi 0, %s120
      %s121 = sphi 0, %s118
      %s122 = sphi 0, %s121
      %s138 = sphi 0, %s122
      %s146 = sphi 0, %s148
      %s149 = sphi 0, %s146
      %s150 = sphi 0, %s149
      %s166 = sphi 0, %s150
    $region4: #{tpu_custom_call.1} parent=1 // loop_header_branch
      %19 = sbr.rel (%p17) target = $region8
    $region5: #{tpu_custom_call.1} parent=1 // loop_body
      %s21 = ssub.s32 %s16, 1
      %s22 = ssub.s32 %s16, 2
      %s29 = sadd.s32 1, %s24
      %p30 = scmp.ge.s32.totalorder %s29, 2
      %s31 = scalar_select %p30, 0, %s29
      %s32 = sadd.s32 1, %s23
      %s33 = scalar_select %p30, %s32, %s23
      %p34 = scmp.ge.s32.totalorder %s33, 1
      %s35 = scalar_select %p34, 0, %s33
      %s36 = ssub.s32 %s24, %s31
      %s37 = ssub.s32 %s23, %s35
      %s38 = sor.u32 %s36, %s37
      %p39 = scmp.eq.s32.totalorder %s38, 0
      %s41 = sadd.s32 %s40, 1
      %s42 = scalar_select %p39, %s40, %s41
      %p45 = pneg %p39
      %p46 = scmp.eq.s32.totalorder %s16, 1
      %p47 = por %p45, %p46
      %p48 = scmp.ne.s32.totalorder %s40, %s43
      %p49 = scmp.eq.s32.totalorder %s16, 0
      %p50 = por %p48, %p49
      %p51 = scmp.ne.s32.totalorder %s40, %s43
      %p52 = scmp.eq.s32.totalorder %s21, 1
      %p53 = por %p51, %p52
      %p54 = scmp.ne.s32.totalorder %s43, %s44
      %p55 = scmp.eq.s32.totalorder %s21, 0
      %p56 = por %p54, %p55
      %p57 = scmp.ne.s32.totalorder %s43, %s44
      %p58 = scmp.eq.s32.totalorder %s22, 1
      %p59 = por %p57, %p58
      %p61 = scmp.ne.s32.totalorder %s44, %s60
      %p62 = scmp.eq.s32.totalorder %s22, 0
      %p63 = por %p61, %p62
      %s64 = ssub.s32 %s23, %s35
      %p65 = scmp.eq.s32.totalorder %s64, 0
      %s67 = sadd.s32 %s66, 1
      %s68 = scalar_select %p65, %s66, %s67
      %p71 = pneg %p65
      %p72 = scmp.eq.s32.totalorder %s16, 1
      %p73 = por %p71, %p72
      %p74 = scmp.ne.s32.totalorder %s66, %s69
      %p75 = scmp.eq.s32.totalorder %s16, 0
      %p76 = por %p74, %p75
      %p77 = scmp.ne.s32.totalorder %s66, %s69
      %p78 = scmp.eq.s32.totalorder %s21, 1
      %p79 = por %p77, %p78
      %p80 = scmp.ne.s32.totalorder %s69, %s70
      %p81 = scmp.eq.s32.totalorder %s21, 0
      %p82 = por %p80, %p81
      %p83 = scmp.ne.s32.totalorder %s69, %s70
      %p84 = scmp.eq.s32.totalorder %s22, 1
      %p85 = por %p83, %p84
      %p87 = scmp.ne.s32.totalorder %s70, %s86
      %p88 = scmp.eq.s32.totalorder %s22, 0
      %p89 = por %p87, %p88
      %s90 = ssub.s32 %s23, %s35
      %p91 = scmp.eq.s32.totalorder %s90, 0
      %s93 = sadd.s32 %s92, 1
      %s94 = scalar_select %p91, %s92, %s93
      %p97 = pneg %p91
      %p98 = scmp.eq.s32.totalorder %s16, 1
      %p99 = por %p97, %p98
      %p100 = scmp.ne.s32.totalorder %s92, %s95
      %p101 = scmp.eq.s32.totalorder %s16, 0
      %p102 = por %p100, %p101
      %p103 = scmp.ne.s32.totalorder %s92, %s95
      %p104 = scmp.eq.s32.totalorder %s21, 1
      %p105 = por %p103, %p104
      %p106 = scmp.ne.s32.totalorder %s95, %s96
      %p107 = scmp.eq.s32.totalorder %s21, 0
      %p108 = por %p106, %p107
      %p109 = scmp.ne.s32.totalorder %s95, %s96
      %p110 = scmp.eq.s32.totalorder %s22, 1
      %p111 = por %p109, %p110
      %p113 = scmp.ne.s32.totalorder %s96, %s112
      %p114 = scmp.eq.s32.totalorder %s22, 0
      %p115 = por %p113, %p114
      %s116 = ssub.s32 %s23, %s35
      %p117 = scmp.eq.s32.totalorder %s116, 0
      %s119 = sadd.s32 %s118, 1
      %s120 = scalar_select %p117, %s118, %s119
      %p123 = pneg %p117
      %p124 = scmp.eq.s32.totalorder %s16, 1
      %p125 = por %p123, %p124
      %p126 = scmp.ne.s32.totalorder %s118, %s121
      %p127 = scmp.eq.s32.totalorder %s16, 0
      %p128 = por %p126, %p127
      %p129 = scmp.ne.s32.totalorder %s118, %s121
      %p130 = scmp.eq.s32.totalorder %s21, 1
      %p131 = por %p129, %p130
      %p132 = scmp.ne.s32.totalorder %s121, %s122
      %p133 = scmp.eq.s32.totalorder %s21, 0
      %p134 = por %p132, %p133
      %p135 = scmp.ne.s32.totalorder %s121, %s122
      %p136 = scmp.eq.s32.totalorder %s22, 1
      %p137 = por %p135, %p136
      %p139 = scmp.ne.s32.totalorder %s122, %s138
      %p140 = scmp.eq.s32.totalorder %s22, 0
      %p141 = por %p139, %p140
      %s142 = ssub.s32 %s24, %s31
      %s143 = ssub.s32 %s23, %s35
      %s144 = sor.u32 %s142, %s143
      %p145 = scmp.eq.s32.totalorder %s144, 0
      %s147 = sadd.s32 %s146, 1
      %s148 = scalar_select %p145, %s146, %s147
      %p151 = pneg %p145
      %p152 = scmp.eq.s32.totalorder %s16, 1
      %p153 = por %p151, %p152
      %p154 = scmp.ne.s32.totalorder %s146, %s149
      %p155 = scmp.eq.s32.totalorder %s16, 0
      %p156 = por %p154, %p155
      %p157 = scmp.ne.s32.totalorder %s146, %s149
      %p158 = scmp.eq.s32.totalorder %s21, 1
      %p159 = por %p157, %p158
      %p160 = scmp.ne.s32.totalorder %s149, %s150
      %p161 = scmp.eq.s32.totalorder %s21, 0
      %p162 = por %p160, %p161
      %p163 = scmp.ne.s32.totalorder %s149, %s150
      %p164 = scmp.eq.s32.totalorder %s22, 1
      %p165 = por %p163, %p164
      %p167 = scmp.ne.s32.totalorder %s150, %s166
      %p168 = scmp.eq.s32.totalorder %s22, 0
      %p169 = por %p167, %p168
      %p170 = scmp.le.s32.totalorder 1, %s16
      %p171 = scmp.lt.s32.totalorder %s16, 3
      %p172 = pnand %p170, %p171
      %p173 = pneg %p172
      // Predicated region
      $region9: #{tpu_custom_call.1} parent=5 // pred_check
        _
      $region10: #{tpu_custom_call.1} parent=5 // pred_check_branch
        %175 = sbr.rel (%p172) target = $region12
      $region11: #{tpu_custom_call.1} parent=5 // pred_region
        %s176 = ssub.s32 %s16, 1
        // Predicated region
        $region13: #{tpu_custom_call.1} parent=11 // pred_check
          %p177 = pneg %p82
        $region14: #{tpu_custom_call.1} parent=11 // pred_check_branch
          %179 = sbr.rel (%p177) target = $region16
        $region15: #{tpu_custom_call.1} parent=11 // pred_region
          %p180 = scmp.lt.s32.totalorder %s25, 0
          %s181 = scalar_select %p180, %s25, 0
          %s182 = smul.addr %s181, 2
          %s183 = scalar_lea.vmem %s1, %s182
        $region16: #{tpu_custom_call.1} parent=11 // pred_fallthru
          _
        // Predicated region
        $region17: #{tpu_custom_call.1} parent=11 // pred_check
          %p184 = pneg %p108
        $region18: #{tpu_custom_call.1} parent=11 // pred_check_branch
          %186 = sbr.rel (%p184) target = $region20
        $region19: #{tpu_custom_call.1} parent=11 // pred_region
          %p187 = scmp.lt.s32.totalorder %s25, 0
          %s188 = scalar_select %p187, %s25, 0
          %s189 = smul.addr %s188, 2
          %s190 = scalar_lea.vmem %s2, %s189
        $region20: #{tpu_custom_call.1} parent=11 // pred_fallthru
          _
        // Predicated region
        $region21: #{tpu_custom_call.1} parent=11 // pred_check
          %p191 = pneg %p134
        $region22: #{tpu_custom_call.1} parent=11 // pred_check_branch
          %193 = sbr.rel (%p191) target = $region24
        $region23: #{tpu_custom_call.1} parent=11 // pred_region
          %p194 = scmp.lt.s32.totalorder %s25, 0
          %s195 = scalar_select %p194, %s25, 0
          %s196 = smul.addr %s195, 2
          %s197 = scalar_lea.vmem %s3, %s196
        $region24: #{tpu_custom_call.1} parent=11 // pred_fallthru
          _
      $region12: #{tpu_custom_call.1} parent=5 // pred_fallthru
        _
      %p198 = scmp.lt.s32.totalorder %s16, 2
      // Predicated region
      $region25: #{tpu_custom_call.1} parent=5 // pred_check
        %p199 = pneg %p198
      $region26: #{tpu_custom_call.1} parent=5 // pred_check_branch
        %201 = sbr.rel (%p199) target = $region28
      $region27: #{tpu_custom_call.1} parent=5 // pred_region
        // Predicated region
        $region29: #{tpu_custom_call.1} parent=27 // pred_check
          %p202 = pneg %p50
        $region30: #{tpu_custom_call.1} parent=27 // pred_check_branch
          %204 = sbr.rel (%p202) target = $region32
        $region31: #{tpu_custom_call.1} parent=27 // pred_region
          %s205 = sand.u32 %s40, 1
          %s206 = scalar_lea.sflag [#allocation3], %s205
          %s207 = sand.u32 %s40, 1
          %s208 = smul.addr %s207, 2
          %s209 = scalar_lea.vmem [#allocation2], %s208
          %s211 = ssub.s32 32, 32
          %212 = vsyncadd %s206, %s211
          %s213 = sadd.s32 %s23, %s24
          %s214 = smul.addr %s213, 32
          %s215 = scalar_lea.hbm %s0, %s214
          %s217 = sshll.u32 %s209, 4
          %s218 = int_to_ptr.vmem [resolvable:$true] %s217
          %220 = dma.hbm_to_vmem [thread:$0]  %s215, 32, %s218, %s206
        $region32: #{tpu_custom_call.1} parent=27 // pred_fallthru
          _
      $region28: #{tpu_custom_call.1} parent=5 // pred_fallthru
        _
      %p221 = scmp.le.s32.totalorder 1, %s16
      %p222 = scmp.lt.s32.totalorder %s16, 3
      %p223 = pnand %p221, %p222
      %p224 = pneg %p223
      // Predicated region
      $region33: #{tpu_custom_call.1} parent=5 // pred_check
        _
      $region34: #{tpu_custom_call.1} parent=5 // pred_check_branch
        %226 = sbr.rel (%p223) target = $region36
      $region35: #{tpu_custom_call.1} parent=5 // pred_region
        %s227 = ssub.s32 %s16, 1
        %s228 = sand.u32 %s43, 1
        %s229 = scalar_lea.sflag [#allocation3], %s228
        %s230 = sand.u32 %s43, 1
        %s231 = smul.addr %s230, 2
        %s232 = scalar_lea.vmem [#allocation2], %s231
        // Predicated region
        $region37: #{tpu_custom_call.1} parent=35 // pred_check
          %p233 = pneg %p56
        $region38: #{tpu_custom_call.1} parent=35 // pred_check_branch
          %235 = sbr.rel (%p233) target = $region40
        $region39: #{tpu_custom_call.1} parent=35 // pred_region
          %236 = dma.done %s229, 32
        $region40: #{tpu_custom_call.1} parent=35 // pred_fallthru
          _
        %s237 = sand.u32 %s43, 1
        %s238 = scalar_lea.sflag [#allocation3], %s237
        %s239 = sand.u32 %s43, 1
        %s240 = smul.addr %s239, 2
        %s241 = scalar_lea.vmem [#allocation2], %s240
        %p242 = pneg %p56
        %p243 = pneg %p53
        %p244 = scmp.lt.s32.totalorder %s25, 0
        %s245 = scalar_select %p244, %s25, 0
        %s246 = smul.addr %s245, 2
        %s247 = scalar_lea.vmem %s1, %s246
        %p248 = pneg %p82
        %p249 = pneg %p79
        %p250 = scmp.lt.s32.totalorder %s25, 0
        %s251 = scalar_select %p250, %s25, 0
        %s252 = smul.addr %s251, 2
        %s253 = scalar_lea.vmem %s2, %s252
        %p254 = pneg %p108
        %p255 = pneg %p105
        %p256 = scmp.lt.s32.totalorder %s25, 0
        %s257 = scalar_select %p256, %s25, 0
        %s258 = smul.addr %s257, 2
        %s259 = scalar_lea.vmem %s3, %s258
        %p260 = pneg %p134
        %p261 = pneg %p131
        %p262 = pneg %p162
        %p263 = pneg %p159
        %s264 = sand.u32 %s149, 1
        %s265 = scalar_lea.sflag [#allocation4], %s264
        %s266 = sand.u32 %s149, 1
        %s267 = smul.addr %s266, 2
        %s268 = scalar_lea.vmem [#allocation5], %s267
        %p269 = scmp.lt.s32.totalorder %s25, 0
        %s270 = scalar_select %p269, %s25, 0
        %s271 = smul.addr %s270, 2
        %s272 = scalar_lea.vmem %s1, %s271
        %p273 = scmp.lt.s32.totalorder %s25, 0
        %s274 = scalar_select %p273, %s25, 0
        %s275 = smul.addr %s274, 2
        %s276 = scalar_lea.vmem %s2, %s275
        %p277 = scmp.lt.s32.totalorder %s25, 0
        %s278 = scalar_select %p277, %s25, 0
        %s279 = smul.addr %s278, 2
        %s280 = scalar_lea.vmem %s3, %s279
        %v281 = vld [vmem:[%s232] sm:$0x3]
        %282 = vrot.lane.b32.xlu0 %v281, 1
        %v283 = vpop.permute.xlu0 %282
        %284 = vrot.lane.b32.xlu0 %v281, 127
        %v285 = vpop.permute.xlu0 %284
        %v286 = vld [vmem:[%s272] sm:$0x3]
        %v287 = vld [vmem:[%s276] sm:$0x3]
        %v288 = vld [vmem:[%s280] sm:$0x3]
        %v289 = vmul.f32 %v281, %v286
        %v290 = vmul.f32 %v285, %v287
        %v291 = vadd.f32 %v289, %v290
        %v292 = vmul.f32 %v283, %v288
        %v293 = vadd.f32 %v291, %v292
        %294 = vst [vmem:[%s268] sm:$0x3] %v293
        %s295 = sand.u32 %s149, 1
        %s296 = scalar_lea.sflag [#allocation4], %s295
        %s297 = sand.u32 %s149, 1
        %s298 = smul.addr %s297, 2
        %s299 = scalar_lea.vmem [#allocation5], %s298
        // Predicated region
        $region41: #{tpu_custom_call.1} parent=35 // pred_check
          %p300 = pneg %p159
        $region42: #{tpu_custom_call.1} parent=35 // pred_check_branch
          %302 = sbr.rel (%p300) target = $region44
        $region43: #{tpu_custom_call.1} parent=35 // pred_region
          %s304 = ssub.s32 32, 32
          %305 = vsyncadd %s296, %s304
          %s306 = sadd.s32 %s25, %s26
          %s307 = smul.addr %s306, 32
          %s308 = scalar_lea.hbm %s4, %s307
          %s310 = sshll.u32 %s299, 4
          %s311 = int_to_ptr.vmem [resolvable:$true] %s310
          %313 = dma.vmem_to_hbm [thread:$0]  %s311, 32, %s308, %s296
        $region44: #{tpu_custom_call.1} parent=35 // pred_fallthru
          _
      $region36: #{tpu_custom_call.1} parent=5 // pred_fallthru
        _
      %p314 = scmp.le.s32.totalorder 2, %s16
      // Predicated region
      $region45: #{tpu_custom_call.1} parent=5 // pred_check
        %p315 = pneg %p314
      $region46: #{tpu_custom_call.1} parent=5 // pred_check_branch
        %317 = sbr.rel (%p315) target = $region48
      $region47: #{tpu_custom_call.1} parent=5 // pred_region
        %s318 = ssub.s32 %s16, 2
        // Predicated region
        $region49: #{tpu_custom_call.1} parent=47 // pred_check
          %p319 = pneg %p165
        $region50: #{tpu_custom_call.1} parent=47 // pred_check_branch
          %321 = sbr.rel (%p319) target = $region52
        $region51: #{tpu_custom_call.1} parent=47 // pred_region
          %s322 = sand.u32 %s150, 1
          %s323 = scalar_lea.sflag [#allocation4], %s322
          %s324 = sand.u32 %s150, 1
          %s325 = smul.addr %s324, 2
          %s326 = scalar_lea.vmem [#allocation5], %s325
          %327 = dma.done %s323, 32
        $region52: #{tpu_custom_call.1} parent=47 // pred_fallthru
          _
      $region48: #{tpu_custom_call.1} parent=5 // pred_fallthru
        _
    $region6: #{tpu_custom_call.1} parent=1 // loop_footer
      %s20 = sadd.s32 1, %s16
    $region7: #{tpu_custom_call.1} parent=1 // loop_footer_branch
      %15 = sbr.rel target = $region3
    $region8: #{tpu_custom_call.1} parent=1 // loop_exit
      _
    %328 = vsyncpa [#allocation3], 1
    %s329 = scalar_lea.sflag [#allocation3], 1
    %330 = vsyncpa %s329, 1
    %331 = vsyncpa [#allocation4], 1
    %s332 = scalar_lea.sflag [#allocation4], 1
    %333 = vsyncpa %s332, 1

</llo_original>
